<compile_context>
chip_gen: v5e
topology: v5e:2x2
jax: 0.10.0
libtpu: 0.0.40
codegen_flags: <defaults>
</compile_context>

<pallas_src>
import jax
import jax.numpy as jnp
from jax.experimental import pallas as pl
from jax.experimental.pallas import tpu as pltpu


def _round_up(x, m):
    return ((x + m - 1) // m) * m


def _make_kernel(matmul_dtype):
    """Kernel specialized on the (static) matmul operand dtype."""

    def kernel(x_ref, w1_ref, b1_ref, w2_ref, b2_ref, o_ref):
        # x: (TB, F) input dtype; w1: (F, H_pad); b1: (1, H_pad) f32
        # w2: (H_pad, C_pad); b2: (1, C_pad) f32; o: (TB, C_pad) out dtype
        x = x_ref[...].astype(matmul_dtype)
        h = jnp.dot(x, w1_ref[...], preferred_element_type=jnp.float32)
        h = jnp.maximum(h + b1_ref[...], 0.0)              # bias + ReLU in f32
        a = jnp.dot(h.astype(matmul_dtype), w2_ref[...],
                    preferred_element_type=jnp.float32)
        a = a + b2_ref[...]                                  # implicit broadcast
        o_ref[...] = jax.nn.sigmoid(a).astype(o_ref.dtype)   # final dtype store

    return kernel


def channel_attention_text(confidences, w1, b1, w2, b2, *,
                           batch_tile=None,
                           matmul_dtype=jnp.bfloat16,
                           vmem_budget_bytes=20 * 1024 * 1024):
    """confidences: (B, 56). Returns attention of shape (B, C, 1, 1)."""
    B, F = confidences.shape
    F_w, H = w1.shape
    H_w, C = w2.shape
    assert F_w == F and H_w == H and b1.shape == (H,) and b2.shape == (C,)
    out_dtype = confidences.dtype

    # Lane-dense padded widths for the MXU path (free on the MXU: N=H and
    # N=128 cost the same vmatmul; padded rows/cols are zeros -> exact).
    H_pad = _round_up(H, 128)
    C_pad = _round_up(C, 128)

    x_bytes = jnp.dtype(confidences.dtype).itemsize
    out_bytes = jnp.dtype(out_dtype).itemsize
    w_bytes = jnp.dtype(matmul_dtype).itemsize

    # --- TB from a VMEM budget (double-buffered tiles + resident weights) ---
    weight_bytes = 2 * (F * H_pad * w_bytes + H_pad * C_pad * w_bytes
                        + H_pad * 4 + C_pad * 4)
    per_row = 2 * (F * x_bytes + C_pad * out_bytes)
    avail = max(vmem_budget_bytes - weight_bytes, 8 * per_row)
    tb_cap = max(8, (avail // per_row) // 8 * 8)
    if batch_tile is not None:
        assert batch_tile >= 8 and batch_tile % 8 == 0, \
            "batch_tile must be a multiple of 8"
        tb_cap = min(tb_cap, batch_tile)

    B_r = _round_up(B, 8)
    # >=2 grid steps when the batch allows it (v7x dual TensorCore), with
    # near-zero padded-row waste.
    n_steps = 1 if B_r <= 8 else max(2, pl.cdiv(B_r, tb_cap))
    TB = _round_up(pl.cdiv(B_r, n_steps), 8)
    B_pad = TB * n_steps

    # --- wrapper-side layout plumbing (weights only; x is passed as-is) -----
    x = confidences
    if B_pad != B:
        x = jnp.pad(confidences, ((0, B_pad - B), (0, 0)))

    w1_p = jnp.zeros((F, H_pad), matmul_dtype).at[:, :H].set(
        w1.astype(matmul_dtype))
    b1_p = jnp.zeros((1, H_pad), jnp.float32).at[0, :H].set(
        b1.astype(jnp.float32))
    w2_p = jnp.zeros((H_pad, C_pad), matmul_dtype).at[:H, :C].set(
        w2.astype(matmul_dtype))
    b2_p = jnp.zeros((1, C_pad), jnp.float32).at[0, :C].set(
        b2.astype(jnp.float32))

    cost = pl.CostEstimate(
        flops=2 * B_pad * (F * H_pad + H_pad * C_pad),
        transcendentals=B_pad * C_pad,
        bytes_accessed=(B_pad * F * x_bytes
                        + F * H_pad * w_bytes + H_pad * 4
                        + H_pad * C_pad * w_bytes + C_pad * 4
                        + B_pad * C_pad * out_bytes),
    )

    attn = pl.pallas_call(
        _make_kernel(matmul_dtype),
        out_shape=jax.ShapeDtypeStruct((B_pad, C_pad), out_dtype),
        grid=(n_steps,),
        in_specs=[
            pl.BlockSpec((TB, F), lambda i: (i, 0)),        # batch-tiled input
            pl.BlockSpec((F, H_pad), lambda i: (0, 0)),     # resident weights
            pl.BlockSpec((1, H_pad), lambda i: (0, 0)),
            pl.BlockSpec((H_pad, C_pad), lambda i: (0, 0)),
            pl.BlockSpec((1, C_pad), lambda i: (0, 0)),
        ],
        out_specs=pl.BlockSpec((TB, C_pad), lambda i: (i, 0)),
        compiler_params=pltpu.CompilerParams(
            dimension_semantics=("parallel",),
            vmem_limit_bytes=32 * 1024 * 1024,
        ),
        cost_estimate=cost,
    )(x, w1_p, b1_p, w2_p, b2_p)

    if B_pad != B or C_pad != C:
        attn = attn[:B, :C]
    # unsqueeze(2).unsqueeze(3): (B, C) -> (B, C, 1, 1)
    return attn.reshape(B, C, 1, 1)


def _init_params(key, in_channels, reduction=16, in_features=56):
    """Deterministic init mimicking nn.Linear defaults (uniform +-1/sqrt(fan_in))."""
    hidden = in_channels // reduction
    k1, k2, k3, k4 = jax.random.split(key, 4)
    bound1 = 1.0 / jnp.sqrt(in_features)
    bound2 = 1.0 / jnp.sqrt(hidden)
    w1 = jax.random.uniform(k1, (in_features, hidden), jnp.float32, -bound1, bound1)
    b1 = jax.random.uniform(k2, (hidden,), jnp.float32, -bound1, bound1)
    w2 = jax.random.uniform(k3, (hidden, in_channels), jnp.float32, -bound2, bound2)
    b2 = jax.random.uniform(k4, (in_channels,), jnp.float32, -bound2, bound2)
    return w1, b1, w2, b2


def _reference(confidences, w1, b1, w2, b2):
    h = jnp.maximum(confidences @ w1 + b1, 0.0)
    a = jax.nn.sigmoid(h @ w2 + b2)
    return a[:, :, None, None]


if __name__ == "__main__":
    key = jax.random.PRNGKey(0)
    k_x, k_p, k_x2, k_p2 = jax.random.split(key, 4)

    # --- check 1: module-default small config (B=2, C=64, reduction=16) ----
    B, in_channels, reduction = 2, 64, 16
    confidences = jax.random.normal(k_x, (B, 56), dtype=jnp.float32)
    w1, b1, w2, b2 = _init_params(k_p, in_channels, reduction)
    ref = _reference(confidences, w1, b1, w2, b2)

    # 1a: exact f32 path (tight tolerance)
    out_f32 = channel_attention_text(confidences, w1, b1, w2, b2,
                                     matmul_dtype=jnp.float32)
    out_f32 = jax.block_until_ready(out_f32)
    assert out_f32.shape == (B, in_channels, 1, 1)
    assert jnp.allclose(out_f32, ref, atol=1e-5, rtol=1e-5)

    # 1b: default bf16-matmul path (native MXU; looser tolerance vs f32 ref)
    out_bf = channel_attention_text(confidences, w1, b1, w2, b2)
    out_bf = jax.block_until_ready(out_bf)
    assert out_bf.shape == (B, in_channels, 1, 1)
    assert jnp.allclose(out_bf, ref, atol=1e-2, rtol=1e-2)

    # --- check 2: batched config exercising the multi-step batch grid ------
    B2, in_channels2 = 300, 256
    confidences2 = jax.random.normal(k_x2, (B2, 56), dtype=jnp.float32)
    w1b, b1b, w2b, b2b = _init_params(k_p2, in_channels2, reduction)
    ref2 = _reference(confidences2, w1b, b1b, w2b, b2b)

    out2 = channel_attention_text(confidences2, w1b, b1b, w2b, b2b,
                                  batch_tile=128)
    out2 = jax.block_until_ready(out2)
    assert out2.shape == (B2, in_channels2, 1, 1)
    assert jnp.allclose(out2, ref2, atol=1e-2, rtol=1e-2)

    print("KERNEL_OK")
</pallas_src>

<mosaic_0001>
module attributes {stable_mosaic.version = 11 : i64} {
  func.func @kernel(%arg0: i32, %arg1: memref<8x56xf32, #tpu.memory_space<vmem>>, %arg2: memref<56x128xf32, #tpu.memory_space<vmem>>, %arg3: memref<1x128xf32, #tpu.memory_space<vmem>>, %arg4: memref<128x128xf32, #tpu.memory_space<vmem>>, %arg5: memref<1x128xf32, #tpu.memory_space<vmem>>, %arg6: memref<8x128xf32, #tpu.memory_space<vmem>>) attributes {dimension_semantics = [#tpu.dimension_semantics<parallel>], iteration_bounds = array<i64: 1>, scalar_prefetch = 0 : i64, scratch_operands = 0 : i64, tpu.core_type = #tpu.core_type<tc>, window_params = [{transform_indices = @transform_0, window_bounds = array<i64: 8, 56>}, {pipeline_mode = #tpu.pipeline_mode<synchronous>, transform_indices = @transform_1, window_bounds = array<i64: 56, 128>}, {pipeline_mode = #tpu.pipeline_mode<synchronous>, transform_indices = @transform_2, window_bounds = array<i64: 1, 128>}, {pipeline_mode = #tpu.pipeline_mode<synchronous>, transform_indices = @transform_3, window_bounds = array<i64: 128, 128>}, {pipeline_mode = #tpu.pipeline_mode<synchronous>, transform_indices = @transform_4, window_bounds = array<i64: 1, 128>}, {transform_indices = @transform_5, window_bounds = array<i64: 8, 128>}]} {
    %c0 = arith.constant 0 : index
    %c0_0 = arith.constant 0 : index
    %0 = vector.load %arg1[%c0, %c0_0] : memref<8x56xf32, #tpu.memory_space<vmem>>, vector<8x56xf32>
    %c0_1 = arith.constant 0 : index
    %c0_2 = arith.constant 0 : index
    %1 = vector.load %arg2[%c0_1, %c0_2] : memref<56x128xf32, #tpu.memory_space<vmem>>, vector<56x128xf32>
    %cst = arith.constant dense<0.000000e+00> : vector<8x128xf32>
    %2 = tpu.matmul %0, %1, %cst {dimension_numbers = #tpu.dot_dimension_numbers<[1], [0], [0], [1], [0, 0, 1, 1], [], []>} : vector<8x56xf32>, vector<56x128xf32>, vector<8x128xf32> -> vector<8x128xf32>
    %c0_3 = arith.constant 0 : index
    %c0_4 = arith.constant 0 : index
    %3 = vector.load %arg3[%c0_3, %c0_4] : memref<1x128xf32, #tpu.memory_space<vmem>>, vector<1x128xf32>
    %4 = vector.broadcast %3 : vector<1x128xf32> to vector<8x128xf32>
    %5 = arith.addf %2, %4 : vector<8x128xf32>
    %cst_5 = arith.constant 0.000000e+00 : f32
    %6 = vector.broadcast %cst_5 : f32 to vector<8x128xf32>
    %7 = arith.maximumf %5, %6 : vector<8x128xf32>
    %c0_6 = arith.constant 0 : index
    %c0_7 = arith.constant 0 : index
    %8 = vector.load %arg4[%c0_6, %c0_7] : memref<128x128xf32, #tpu.memory_space<vmem>>, vector<128x128xf32>
    %cst_8 = arith.constant dense<0.000000e+00> : vector<8x128xf32>
    %9 = tpu.matmul %7, %8, %cst_8 {dimension_numbers = #tpu.dot_dimension_numbers<[1], [0], [0], [1], [0, 0, 1, 1], [], []>} : vector<8x128xf32>, vector<128x128xf32>, vector<8x128xf32> -> vector<8x128xf32>
    %c0_9 = arith.constant 0 : index
    %c0_10 = arith.constant 0 : index
    %10 = vector.load %arg5[%c0_9, %c0_10] : memref<1x128xf32, #tpu.memory_space<vmem>>, vector<1x128xf32>
    %11 = vector.broadcast %10 : vector<1x128xf32> to vector<8x128xf32>
    %12 = arith.addf %9, %11 : vector<8x128xf32>
    %13 = arith.negf %12 : vector<8x128xf32>
    %14 = math.exp %13 : vector<8x128xf32>
    %cst_11 = arith.constant 1.000000e+00 : f32
    %15 = vector.broadcast %cst_11 : f32 to vector<8x128xf32>
    %16 = arith.addf %15, %14 : vector<8x128xf32>
    %17 = arith.divf %15, %16 : vector<8x128xf32>
    %c0_12 = arith.constant 0 : index
    %c0_13 = arith.constant 0 : index
    %18 = vector.load %arg6[%c0_12, %c0_13] : memref<8x128xf32, #tpu.memory_space<vmem>>, vector<8x128xf32>
    tpu.vector_store %arg6[%c0_12, %c0_13], %17 {strides = array<i32>} : memref<8x128xf32, #tpu.memory_space<vmem>>, vector<8x128xf32>,
    return
  }
  func.func @transform_0(%arg0: i32) -> (i32, i32) {
    %c0_i32 = arith.constant 0 : i32
    %c0_i32_0 = arith.constant 0 : i32
    return %arg0, %c0_i32 : i32, i32
  }
  func.func @transform_1(%arg0: i32) -> (i32, i32) {
    %c0_i32 = arith.constant 0 : i32
    %c0_i32_0 = arith.constant 0 : i32
    %c0_i32_1 = arith.constant 0 : i32
    return %c0_i32, %c0_i32_0 : i32, i32
  }
  func.func @transform_2(%arg0: i32) -> (i32, i32) {
    %c0_i32 = arith.constant 0 : i32
    %c0_i32_0 = arith.constant 0 : i32
    %c0_i32_1 = arith.constant 0 : i32
    return %c0_i32, %c0_i32_0 : i32, i32
  }
  func.func @transform_3(%arg0: i32) -> (i32, i32) {
    %c0_i32 = arith.constant 0 : i32
    %c0_i32_0 = arith.constant 0 : i32
    %c0_i32_1 = arith.constant 0 : i32
    return %c0_i32, %c0_i32_0 : i32, i32
  }
  func.func @transform_4(%arg0: i32) -> (i32, i32) {
    %c0_i32 = arith.constant 0 : i32
    %c0_i32_0 = arith.constant 0 : i32
    %c0_i32_1 = arith.constant 0 : i32
    return %c0_i32, %c0_i32_0 : i32, i32
  }
  func.func @transform_5(%arg0: i32) -> (i32, i32) {
    %c0_i32 = arith.constant 0 : i32
    %c0_i32_0 = arith.constant 0 : i32
    return %arg0, %c0_i32 : i32, i32
  }
}

</mosaic_0001>

<llo_original>
// kernel: tpu_custom_call.1
$region0: #{tpu_custom_call.1}
  #allocation0 [shape = 'u32[]', space=smem, size = 0x4, offset = 0x4, fixed_abs, tag = 'smem constant byte address 0x4 - core index']
  #allocation1 [shape = 'u32[72,128]{1,0:T(1,128)}', space=vmem, size = 0x9000, scoped, tag = 'internal scratch']
  %s0 = inlined_call_operand.hbm [shape: f32[8,56], index: 0, kind: input, shape index: {}]
  %s1 = inlined_call_operand.hbm [shape: f32[56,128], index: 1, kind: input, shape index: {}]
  %s2 = inlined_call_operand.vmem [shape: f32[1,128], index: 2, kind: input, shape index: {}]
  %s3 = inlined_call_operand.hbm [shape: f32[128,128], index: 3, kind: input, shape index: {}]
  %s4 = inlined_call_operand.vmem [shape: f32[1,128], index: 4, kind: input, shape index: {}]
  %s5 = inlined_call_operand.hbm [shape: f32[8,128], index: 5, kind: output, shape index: {}]
  %s6 = sld [smem:[#allocation0]]
  $region42: #{tpu_custom_call.1} parent=0
    _
  %s8 = ssub.s32 1, %s6
  %s9 = scalar_select 0, %s8, %s6
  $region1: #{tpu_custom_call.1} parent=0
    #allocation2 [shape = 'u8[4096]{0}', space=vmem, size = 0x1000, scoped, tag = 'input window, operand 0, single buffered']
    #allocation3 [shape = 's32[1]{0}', space=sflag, size = 0x4, scoped, tag = 'scoped memory for tpu_custom_call.1']
    #allocation4 [shape = 's32[1]{0}', space=sflag, size = 0x4, scoped, tag = 'scoped memory for tpu_custom_call.1']
    #allocation5 [shape = 'u8[28672]{0}', space=vmem, size = 0x7000, scoped, tag = 'input window, operand 1, single buffered']
    #allocation6 [shape = 's32[1]{0}', space=sflag, size = 0x4, scoped, tag = 'scoped memory for tpu_custom_call.1']
    #allocation7 [shape = 'u8[65536]{0}', space=vmem, size = 0x10000, scoped, tag = 'input window, operand 3, single buffered']
    #allocation8 [shape = 'u8[4096]{0}', space=vmem, size = 0x1000, scoped, tag = 'output window, operand 0, single buffered']
    %10 = vsyncpa [#allocation3], 0
    %11 = vsyncpa [#allocation6], 0
    %12 = vsyncpa [#allocation4], 0
    // Predicated region
    $region2: #{tpu_custom_call.1} parent=1 // pred_check
      _
    $region3: #{tpu_custom_call.1} parent=1 // pred_check_branch
      %14 = sbr.rel (0) target = $region5
    $region4: #{tpu_custom_call.1} parent=1 // pred_region
      %16 = vsyncadd [#allocation3], 0
      %s18 = sshll.u32 %s0, 4
      %s19 = int_to_ptr.hbm [resolvable:$true] %s18
      %s20 = sshll.u32 [#allocation2], 4
      %s21 = int_to_ptr.vmem [resolvable:$true] %s20
      %23 = dma.hbm_to_vmem [thread:$0]  %s19, 128, %s21, [#allocation3]
    $region5: #{tpu_custom_call.1} parent=1 // pred_fallthru
      _
    // Predicated region
    $region6: #{tpu_custom_call.1} parent=1 // pred_check
      _
    $region7: #{tpu_custom_call.1} parent=1 // pred_check_branch
      %25 = sbr.rel (0) target = $region9
    $region8: #{tpu_custom_call.1} parent=1 // pred_region
      %27 = vsyncadd [#allocation6], 0
      %s28 = sshll.u32 %s1, 4
      %s29 = int_to_ptr.hbm [resolvable:$true] %s28
      %s30 = sshll.u32 [#allocation5], 4
      %s31 = int_to_ptr.vmem [resolvable:$true] %s30
      %36 = dma.hbm_to_vmem [thread:$0]  %s29, 896, %s31, [#allocation6], 128, 128, 8
    $region9: #{tpu_custom_call.1} parent=1 // pred_fallthru
      _
    // Predicated region
    $region10: #{tpu_custom_call.1} parent=1 // pred_check
      _
    $region11: #{tpu_custom_call.1} parent=1 // pred_check_branch
      %38 = sbr.rel (0) target = $region13
    $region12: #{tpu_custom_call.1} parent=1 // pred_region
      _
    $region13: #{tpu_custom_call.1} parent=1 // pred_fallthru
      _
    // Predicated region
    $region14: #{tpu_custom_call.1} parent=1 // pred_check
      _
    $region15: #{tpu_custom_call.1} parent=1 // pred_check_branch
      %40 = sbr.rel (0) target = $region17
    $region16: #{tpu_custom_call.1} parent=1 // pred_region
      %42 = vsyncadd [#allocation6], 0
      %s43 = sshll.u32 %s3, 4
      %s44 = int_to_ptr.hbm [resolvable:$true] %s43
      %s45 = sshll.u32 [#allocation7], 4
      %s46 = int_to_ptr.vmem [resolvable:$true] %s45
      %51 = dma.hbm_to_vmem [thread:$0]  %s44, 2048, %s46, [#allocation6], 128, 128, 8
    $region17: #{tpu_custom_call.1} parent=1 // pred_fallthru
      _
    // Predicated region
    $region18: #{tpu_custom_call.1} parent=1 // pred_check
      _
    $region19: #{tpu_custom_call.1} parent=1 // pred_check_branch
      %53 = sbr.rel (0) target = $region21
    $region20: #{tpu_custom_call.1} parent=1 // pred_region
      _
    $region21: #{tpu_custom_call.1} parent=1 // pred_fallthru
      _
    // Predicated region
    $region22: #{tpu_custom_call.1} parent=1 // pred_check
      _
    $region23: #{tpu_custom_call.1} parent=1 // pred_check_branch
      %55 = sbr.rel (0) target = $region25
    $region24: #{tpu_custom_call.1} parent=1 // pred_region
      %57 = dma.done [#allocation3], 128
    $region25: #{tpu_custom_call.1} parent=1 // pred_fallthru
      _
    // Predicated region
    $region26: #{tpu_custom_call.1} parent=1 // pred_check
      _
    $region27: #{tpu_custom_call.1} parent=1 // pred_check_branch
      %59 = sbr.rel (0) target = $region29
    $region28: #{tpu_custom_call.1} parent=1 // pred_region
      %61 = dma.done [#allocation6], 896
    $region29: #{tpu_custom_call.1} parent=1 // pred_fallthru
      _
    // Predicated region
    $region30: #{tpu_custom_call.1} parent=1 // pred_check
      _
    $region31: #{tpu_custom_call.1} parent=1 // pred_check_branch
      %63 = sbr.rel (0) target = $region33
    $region32: #{tpu_custom_call.1} parent=1 // pred_region
      %65 = dma.done [#allocation6], 2048
    $region33: #{tpu_custom_call.1} parent=1 // pred_fallthru
      _
    %v66 = vld [vmem:[#allocation2] sm:$0xff]
    %v67 = vld [vmem:[#allocation5] sm:$0xff]
    %v68 = vld [vmem:[#allocation5 + $0x8] sm:$0xff]
    %v69 = vld [vmem:[#allocation5 + $0x10] sm:$0xff]
    %v70 = vld [vmem:[#allocation5 + $0x18] sm:$0xff]
    %v71 = vld [vmem:[#allocation5 + $0x20] sm:$0xff]
    %v72 = vld [vmem:[#allocation5 + $0x28] sm:$0xff]
    %v73 = vld [vmem:[#allocation5 + $0x30] sm:$0xff]
    %v74 = vld [vmem:[%s2] sm:$0x1]
    %v76 = vperm.slane %v74, 0
    %vm78 = vcmask 457728
    %v80 = vsel %vm78, %v66, 0
    %82 = vmatpush.msra.mxu0 0.0
    %83 = vmatpush.msra.mxu0 0.0
    %84 = vmatpush.msra.mxu0 0.0
    %85 = vmatpush.msra.mxu0 0.0
    %86 = vmatpush.msra.mxu0 0.0
    %87 = vmatpush.msra.mxu0 0.0
    %88 = vmatpush.msra.mxu0 0.0
    %89 = vmatpush.msra.mxu0 0.0
    %90 = vmatpush.msra.mxu0 0.0
    %91 = vmatpush.msra.mxu0 %v73
    %92 = vmatpush.msra.mxu0 %v72
    %93 = vmatpush.msra.mxu0 %v71
    %94 = vmatpush.msra.mxu0 %v70
    %95 = vmatpush.msra.mxu0 %v69
    %96 = vmatpush.msra.mxu0 %v68
    %97 = vmatpush.msra.mxu0 %v67
    %98 = vmatmul.f32.gmra.mxu0 %v80
    %v99 = vpop.f32.mrf.mxu0
    %v100 = vadd.f32 %v76, %v99
    %101 = vdwg.mxu0
    %v102 = vmax.f32 %v100, 0.0
    %v103 = vld [vmem:[#allocation7] sm:$0xff]
    %v104 = vld [vmem:[#allocation7 + $0x8] sm:$0xff]
    %v105 = vld [vmem:[#allocation7 + $0x10] sm:$0xff]
    %v106 = vld [vmem:[#allocation7 + $0x18] sm:$0xff]
    %v107 = vld [vmem:[#allocation7 + $0x20] sm:$0xff]
    %v108 = vld [vmem:[#allocation7 + $0x28] sm:$0xff]
    %v109 = vld [vmem:[#allocation7 + $0x30] sm:$0xff]
    %v110 = vld [vmem:[#allocation7 + $0x38] sm:$0xff]
    %v111 = vld [vmem:[#allocation7 + $0x40] sm:$0xff]
    %v112 = vld [vmem:[#allocation7 + $0x48] sm:$0xff]
    %v113 = vld [vmem:[#allocation7 + $0x50] sm:$0xff]
    %v114 = vld [vmem:[#allocation7 + $0x58] sm:$0xff]
    %v115 = vld [vmem:[#allocation7 + $0x60] sm:$0xff]
    %v116 = vld [vmem:[#allocation7 + $0x68] sm:$0xff]
    %v117 = vld [vmem:[#allocation7 + $0x70] sm:$0xff]
    %v118 = vld [vmem:[#allocation7 + $0x78] sm:$0xff]
    %v119 = vld [vmem:[%s4] sm:$0x1]
    %v121 = vperm.slane %v119, 0
    %123 = vmatpush.msra.mxu0 %v118
    %124 = vmatpush.msra.mxu0 %v117
    %125 = vmatpush.msra.mxu0 %v116
    %126 = vmatpush.msra.mxu0 %v115
    %127 = vmatpush.msra.mxu0 %v114
    %128 = vmatpush.msra.mxu0 %v113
    %129 = vmatpush.msra.mxu0 %v112
    %130 = vmatpush.msra.mxu0 %v111
    %131 = vmatpush.msra.mxu0 %v110
    %132 = vmatpush.msra.mxu0 %v109
    %133 = vmatpush.msra.mxu0 %v108
    %134 = vmatpush.msra.mxu0 %v107
    %135 = vmatpush.msra.mxu0 %v106
    %136 = vmatpush.msra.mxu0 %v105
    %137 = vmatpush.msra.mxu0 %v104
    %138 = vmatpush.msra.mxu0 %v103
    %139 = vmatmul.f32.gmra.mxu0 %v102
    %v140 = vpop.f32.mrf.mxu0
    %v141 = vadd.f32 %v121, %v140
    %142 = vdwg.mxu0
    %v143 = vxor.u32 %v141, 2147483648
    %v144 = vmul.f32 %v143, 1.442695
    %v145 = vpow.pop %v144
    %v146 = vadd.f32 %v145, 1.0
    %v147 = vrcp.pop %v146
    %v148 = vmul.f32 %v146, %v147
    %v149 = vsub.f32 1.0, %v148
    %v150 = vmul.f32 %v147, %v149
    %v151 = vadd.f32 %v147, %v150
    %vm152 = vweird.f32 %v146
    %vm153 = vweird.f32 %v147
    %vm154 = vmor %vm152, %vm153
    %v155 = vsel %vm154, %v147, %v151
    %v156 = vand.u32 2147483647, %v146
    %vm157 = vcmp.eq.f32.partialorder %v156, 8.507059e+37
    %v158 = vand.u32 %v146, 2147483648
    %v159 = vor.u32 1.1754944e-38, %v158
    %v160 = vsel %vm157, %v159, %v155
    %v161 = vmul.f32 1.0, %v160
    %162 = vst [vmem:[#allocation8] sm:$0xff] %v161
    // Predicated region
    $region34: #{tpu_custom_call.1} parent=1 // pred_check
      _
    $region35: #{tpu_custom_call.1} parent=1 // pred_check_branch
      %164 = sbr.rel (0) target = $region37
    $region36: #{tpu_custom_call.1} parent=1 // pred_region
      %166 = vsyncadd [#allocation4], 0
      %s168 = sshll.u32 [#allocation8], 4
      %s169 = int_to_ptr.vmem [resolvable:$true] %s168
      %s170 = sshll.u32 %s5, 4
      %s171 = int_to_ptr.hbm [resolvable:$true] %s170
      %173 = dma.vmem_to_hbm [thread:$0]  %s169, 128, %s171, [#allocation4]
    $region37: #{tpu_custom_call.1} parent=1 // pred_fallthru
      _
    // Predicated region
    $region38: #{tpu_custom_call.1} parent=1 // pred_check
      _
    $region39: #{tpu_custom_call.1} parent=1 // pred_check_branch
      %175 = sbr.rel (0) target = $region41
    $region40: #{tpu_custom_call.1} parent=1 // pred_region
      %177 = dma.done [#allocation4], 128
    $region41: #{tpu_custom_call.1} parent=1 // pred_fallthru
      _
    %178 = vsyncpa [#allocation3], 1
    %179 = vsyncpa [#allocation6], 1
    %180 = vsyncpa [#allocation4], 1

</llo_original>
